<compile_context>
chip_gen: v5e
topology: v5e:2x2
jax: 0.10.0
libtpu: 0.0.40
codegen_flags: <defaults>
</compile_context>

<pallas_src>
import functools

import jax
import jax.numpy as jnp
from jax.experimental import pallas as pl
from jax.experimental.pallas import tpu as pltpu


def _round_up(x, m):
    return ((x + m - 1) // m) * m


# ---------------------------------------------------------------------------
# Kernel
# ---------------------------------------------------------------------------
def vae_forward_kernel(
    x_ref,          # (TB, Dp)       bf16, zero-padded flattened image
    eps_ref,        # (TB, Lp)       f32, zero-padded N(0,1) noise
    w1_ref, b1_ref,     # encoder hidden : (Dp, F) bf16, (1, F) f32
    wml_ref, bml_ref,   # fused mu|logvar: (F, 2*Lp) bf16, (1, 2*Lp) f32
    w3_ref, b3_ref,     # decoder hidden : (Lp, F) bf16, (1, F) f32
    w4_ref, b4_ref,     # decoder output : (F, Dp) bf16, (1, Dp) f32
    xrec_ref,       # out: (TB, Dp)    f32
    mulv_ref,       # out: (TB, 2*Lp)  f32   [ mu | logvar ] slab
):
    lp = wml_ref.shape[1] // 2

    # ----- Encoder: Linear -> ReLU (bf16 MXU, f32 accumulation) -----
    h = jnp.dot(x_ref[...], w1_ref[...], preferred_element_type=jnp.float32) + b1_ref[...]
    h = jnp.maximum(h, 0.0).astype(jnp.bfloat16)

    # ----- Fused mu|logvar heads: one wide matmul -----
    ml = jnp.dot(h, wml_ref[...], preferred_element_type=jnp.float32) + bml_ref[...]
    mu = ml[:, :lp]
    logvar = ml[:, lp:]

    # ----- latent_sample (training mode): z = mu + eps * exp(0.5*logvar) -----
    z = (mu + eps_ref[...] * jnp.exp(0.5 * logvar)).astype(jnp.bfloat16)

    # ----- Decoder: Linear -> ReLU -> Linear -> sigmoid -----
    h2 = jnp.dot(z, w3_ref[...], preferred_element_type=jnp.float32) + b3_ref[...]
    h2 = jnp.maximum(h2, 0.0).astype(jnp.bfloat16)
    logits = jnp.dot(h2, w4_ref[...], preferred_element_type=jnp.float32) + b4_ref[...]

    xrec_ref[...] = jax.nn.sigmoid(logits).astype(xrec_ref.dtype)
    mulv_ref[...] = ml.astype(mulv_ref.dtype)


# ---------------------------------------------------------------------------
# Parameters
# ---------------------------------------------------------------------------
def init_params(key, d_in, fc_size, latent_dims):
    """Deterministic, PyTorch-Linear-style (uniform +/- 1/sqrt(fan_in)) init. f32."""
    def linear(k, fan_in, fan_out):
        kw, kb = jax.random.split(k)
        bound = 1.0 / jnp.sqrt(fan_in)
        w = jax.random.uniform(kw, (fan_in, fan_out), jnp.float32, -bound, bound)
        b = jax.random.uniform(kb, (1, fan_out), jnp.float32, -bound, bound)
        return w, b

    keys = jax.random.split(key, 5)
    w1, b1 = linear(keys[0], d_in, fc_size)          # encoder hidden
    wmu, bmu = linear(keys[1], fc_size, latent_dims)  # mu head
    wlv, blv = linear(keys[2], fc_size, latent_dims)  # logvar head
    w3, b3 = linear(keys[3], latent_dims, fc_size)    # decoder hidden
    w4, b4 = linear(keys[4], fc_size, d_in)           # decoder output
    return (w1, b1, wmu, bmu, wlv, blv, w3, b3, w4, b4)


def _prepare_params(params, d_in, d_pad, latent, l_pad, fc):
    """Zero-pad to lane-aligned shapes, fuse mu|logvar heads, cast weights to bf16."""
    w1, b1, wmu, bmu, wlv, blv, w3, b3, w4, b4 = params

    w1p = jnp.zeros((d_pad, fc), jnp.float32).at[:d_in, :].set(w1)

    wmup = jnp.zeros((fc, l_pad), jnp.float32).at[:, :latent].set(wmu)
    wlvp = jnp.zeros((fc, l_pad), jnp.float32).at[:, :latent].set(wlv)
    bmup = jnp.zeros((1, l_pad), jnp.float32).at[:, :latent].set(bmu)
    blvp = jnp.zeros((1, l_pad), jnp.float32).at[:, :latent].set(blv)
    wml = jnp.concatenate([wmup, wlvp], axis=1)   # (fc, 2*l_pad)
    bml = jnp.concatenate([bmup, blvp], axis=1)   # (1, 2*l_pad)

    w3p = jnp.zeros((l_pad, fc), jnp.float32).at[:latent, :].set(w3)
    w4p = jnp.zeros((fc, d_pad), jnp.float32).at[:, :d_in].set(w4)
    b4p = jnp.zeros((1, d_pad), jnp.float32).at[:, :d_in].set(b4)

    bf = jnp.bfloat16
    return (w1p.astype(bf), b1, wml.astype(bf), bml,
            w3p.astype(bf), b3, w4p.astype(bf), b4p)


# ---------------------------------------------------------------------------
# Wrapper
# ---------------------------------------------------------------------------
@functools.partial(jax.jit,
                   static_argnames=("in_channels", "size", "latent_dims", "fc_size"))
def vae_forward(x_nchw, eps, params, *, in_channels, size, latent_dims, fc_size):
    B = x_nchw.shape[0]
    d_in = in_channels * size * size
    d_pad = _round_up(d_in, 128)          # lane-dense feature dim
    l_pad = _round_up(latent_dims, 128)   # lane-dense per-head latent dim
    F = fc_size

    # Batch tiling: big TB when B is large, sublane-aligned TB for small B.
    TB = 512 if B >= 512 else _round_up(B, 8)
    B_pad = _round_up(B, TB)

    # glue: flatten NCHW -> (B, d_in), pad to (B_pad, d_pad), cast matmul input to bf16.
    x_flat = x_nchw.reshape(B, d_in)
    x_p = (jnp.zeros((B_pad, d_pad), jnp.bfloat16)
           .at[:B, :d_in].set(x_flat.astype(jnp.bfloat16)))
    eps_p = (jnp.zeros((B_pad, l_pad), jnp.float32)
             .at[:B, :latent_dims].set(eps.astype(jnp.float32)))

    w1, b1, wml, bml, w3, b3, w4, b4 = _prepare_params(
        params, d_in, d_pad, latent_dims, l_pad, F)

    # Batch-tiled specs; weights/biases use constant index_maps -> stay resident in VMEM.
    in_specs = [
        pl.BlockSpec((TB, d_pad), lambda i: (i, 0)),        # x
        pl.BlockSpec((TB, l_pad), lambda i: (i, 0)),        # eps
        pl.BlockSpec((d_pad, F), lambda i: (0, 0)),         # w1
        pl.BlockSpec((1, F), lambda i: (0, 0)),             # b1
        pl.BlockSpec((F, 2 * l_pad), lambda i: (0, 0)),     # wml (mu|logvar fused)
        pl.BlockSpec((1, 2 * l_pad), lambda i: (0, 0)),     # bml
        pl.BlockSpec((l_pad, F), lambda i: (0, 0)),         # w3
        pl.BlockSpec((1, F), lambda i: (0, 0)),             # b3
        pl.BlockSpec((F, d_pad), lambda i: (0, 0)),         # w4
        pl.BlockSpec((1, d_pad), lambda i: (0, 0)),         # b4
    ]
    out_specs = (
        pl.BlockSpec((TB, d_pad), lambda i: (i, 0)),        # x_recon (lane-dense)
        pl.BlockSpec((TB, 2 * l_pad), lambda i: (i, 0)),    # [mu | logvar] slab
    )
    out_shape = (
        jax.ShapeDtypeStruct((B_pad, d_pad), jnp.float32),
        jax.ShapeDtypeStruct((B_pad, 2 * l_pad), jnp.float32),
    )

    xrec_p, mulv = pl.pallas_call(
        vae_forward_kernel,
        grid=(B_pad // TB,),
        in_specs=in_specs,
        out_specs=out_specs,
        out_shape=out_shape,
        compiler_params=pltpu.CompilerParams(
            dimension_semantics=("parallel",),   # megacore sharding on v7x
        ),
    )(x_p, eps_p, w1, b1, wml, bml, w3, b3, w4, b4)

    # glue: strip padding, reshape reconstruction back to NCHW, split the mu/logvar slab.
    x_recon = xrec_p[:B, :d_in].reshape(B, in_channels, size, size)
    mu = mulv[:B, :latent_dims]
    logvar = mulv[:B, l_pad:l_pad + latent_dims]
    return x_recon, mu, logvar


# ---------------------------------------------------------------------------
# Pure-JAX reference (f32) for correctness checking
# ---------------------------------------------------------------------------
def vae_reference(x_nchw, eps, params):
    w1, b1, wmu, bmu, wlv, blv, w3, b3, w4, b4 = params
    B = x_nchw.shape[0]
    xf = x_nchw.reshape(B, -1).astype(jnp.float32)
    h = jnp.maximum(xf @ w1 + b1, 0.0)
    mu = h @ wmu + bmu
    logvar = h @ wlv + blv
    z = mu + eps * jnp.exp(0.5 * logvar)
    h2 = jnp.maximum(z @ w3 + b3, 0.0)
    xr = jax.nn.sigmoid(h2 @ w4 + b4)
    return xr.reshape(x_nchw.shape), mu, logvar


if __name__ == "__main__":
    # Small, module-consistent shapes: batch=2, in_channels=1, spatial=16,
    # fc_size=256 and latent_dims=10 (the module defaults).
    B, C, S = 2, 1, 16
    FC, L = 256, 10
    D_IN = C * S * S

    key = jax.random.PRNGKey(0)
    k_x, k_eps, k_params = jax.random.split(key, 3)

    x = jax.random.uniform(k_x, (B, C, S, S), jnp.float32)        # image-like, [0,1)
    eps = jax.random.normal(k_eps, (B, L), jnp.float32)           # reparameterization noise
    params = init_params(k_params, D_IN, FC, L)

    x_recon, mu, logvar = vae_forward(
        x, eps, params, in_channels=C, size=S, latent_dims=L, fc_size=FC)
    jax.block_until_ready((x_recon, mu, logvar))

    assert x_recon.shape == (B, C, S, S)
    assert mu.shape == (B, L) and logvar.shape == (B, L)
    assert bool(jnp.all(jnp.isfinite(x_recon)))

    # Compare against the f32 reference (loose tolerance: bf16 matmul operands).
    xr_ref, mu_ref, lv_ref = vae_reference(x, eps, params)
    assert float(jnp.max(jnp.abs(x_recon - xr_ref))) < 5e-2
    assert float(jnp.max(jnp.abs(mu - mu_ref))) < 5e-2
    assert float(jnp.max(jnp.abs(logvar - lv_ref))) < 5e-2

    print("KERNEL_OK")
</pallas_src>

<mosaic_0001>
module attributes {stable_mosaic.version = 11 : i64} {
  func.func @vae_forward_kernel(%arg0: i32, %arg1: memref<8x256xbf16, #tpu.memory_space<vmem>>, %arg2: memref<8x128xf32, #tpu.memory_space<vmem>>, %arg3: memref<256x256xbf16, #tpu.memory_space<vmem>>, %arg4: memref<1x256xf32, #tpu.memory_space<vmem>>, %arg5: memref<256x256xbf16, #tpu.memory_space<vmem>>, %arg6: memref<1x256xf32, #tpu.memory_space<vmem>>, %arg7: memref<128x256xbf16, #tpu.memory_space<vmem>>, %arg8: memref<1x256xf32, #tpu.memory_space<vmem>>, %arg9: memref<256x256xbf16, #tpu.memory_space<vmem>>, %arg10: memref<1x256xf32, #tpu.memory_space<vmem>>, %arg11: memref<8x256xf32, #tpu.memory_space<vmem>>, %arg12: memref<8x256xf32, #tpu.memory_space<vmem>>) attributes {dimension_semantics = [#tpu.dimension_semantics<parallel>], iteration_bounds = array<i64: 1>, scalar_prefetch = 0 : i64, scratch_operands = 0 : i64, tpu.core_type = #tpu.core_type<tc>, window_params = [{transform_indices = @transform_0, window_bounds = array<i64: 8, 256>}, {transform_indices = @transform_1, window_bounds = array<i64: 8, 128>}, {pipeline_mode = #tpu.pipeline_mode<synchronous>, transform_indices = @transform_2, window_bounds = array<i64: 256, 256>}, {pipeline_mode = #tpu.pipeline_mode<synchronous>, transform_indices = @transform_3, window_bounds = array<i64: 1, 256>}, {pipeline_mode = #tpu.pipeline_mode<synchronous>, transform_indices = @transform_4, window_bounds = array<i64: 256, 256>}, {pipeline_mode = #tpu.pipeline_mode<synchronous>, transform_indices = @transform_5, window_bounds = array<i64: 1, 256>}, {pipeline_mode = #tpu.pipeline_mode<synchronous>, transform_indices = @transform_6, window_bounds = array<i64: 128, 256>}, {pipeline_mode = #tpu.pipeline_mode<synchronous>, transform_indices = @transform_7, window_bounds = array<i64: 1, 256>}, {pipeline_mode = #tpu.pipeline_mode<synchronous>, transform_indices = @transform_8, window_bounds = array<i64: 256, 256>}, {pipeline_mode = #tpu.pipeline_mode<synchronous>, transform_indices = @transform_9, window_bounds = array<i64: 1, 256>}, {transform_indices = @transform_10, window_bounds = array<i64: 8, 256>}, {transform_indices = @transform_11, window_bounds = array<i64: 8, 256>}]} {
    %c0 = arith.constant 0 : index
    %c0_0 = arith.constant 0 : index
    %0 = vector.load %arg1[%c0, %c0_0] : memref<8x256xbf16, #tpu.memory_space<vmem>>, vector<8x256xbf16>
    %c0_1 = arith.constant 0 : index
    %c0_2 = arith.constant 0 : index
    %1 = vector.load %arg3[%c0_1, %c0_2] : memref<256x256xbf16, #tpu.memory_space<vmem>>, vector<256x256xbf16>
    %cst = arith.constant dense<0.000000e+00> : vector<8x256xf32>
    %2 = tpu.matmul %0, %1, %cst {dimension_numbers = #tpu.dot_dimension_numbers<[1], [0], [0], [1], [0, 0, 1, 1], [], []>} : vector<8x256xbf16>, vector<256x256xbf16>, vector<8x256xf32> -> vector<8x256xf32>
    %c0_3 = arith.constant 0 : index
    %c0_4 = arith.constant 0 : index
    %3 = vector.load %arg4[%c0_3, %c0_4] : memref<1x256xf32, #tpu.memory_space<vmem>>, vector<1x256xf32>
    %4 = vector.broadcast %3 : vector<1x256xf32> to vector<8x256xf32>
    %5 = arith.addf %2, %4 : vector<8x256xf32>
    %cst_5 = arith.constant 0.000000e+00 : f32
    %6 = vector.broadcast %cst_5 : f32 to vector<8x256xf32>
    %7 = arith.maximumf %5, %6 : vector<8x256xf32>
    %8 = arith.truncf %7 : vector<8x256xf32> to vector<8x256xbf16>
    %c0_6 = arith.constant 0 : index
    %c0_7 = arith.constant 0 : index
    %9 = vector.load %arg5[%c0_6, %c0_7] : memref<256x256xbf16, #tpu.memory_space<vmem>>, vector<256x256xbf16>
    %cst_8 = arith.constant dense<0.000000e+00> : vector<8x256xf32>
    %10 = tpu.matmul %8, %9, %cst_8 {dimension_numbers = #tpu.dot_dimension_numbers<[1], [0], [0], [1], [0, 0, 1, 1], [], []>} : vector<8x256xbf16>, vector<256x256xbf16>, vector<8x256xf32> -> vector<8x256xf32>
    %c0_9 = arith.constant 0 : index
    %c0_10 = arith.constant 0 : index
    %11 = vector.load %arg6[%c0_9, %c0_10] : memref<1x256xf32, #tpu.memory_space<vmem>>, vector<1x256xf32>
    %12 = vector.broadcast %11 : vector<1x256xf32> to vector<8x256xf32>
    %13 = arith.addf %10, %12 : vector<8x256xf32>
    %14 = vector.extract_strided_slice %13 {offsets = [0, 0], sizes = [8, 128], strides = [1, 1]} : vector<8x256xf32> to vector<8x128xf32>
    %15 = vector.extract_strided_slice %13 {offsets = [0, 128], sizes = [8, 128], strides = [1, 1]} : vector<8x256xf32> to vector<8x128xf32>
    %c0_11 = arith.constant 0 : index
    %c0_12 = arith.constant 0 : index
    %16 = vector.load %arg2[%c0_11, %c0_12] : memref<8x128xf32, #tpu.memory_space<vmem>>, vector<8x128xf32>
    %cst_13 = arith.constant 5.000000e-01 : f32
    %17 = vector.broadcast %cst_13 : f32 to vector<8x128xf32>
    %18 = arith.mulf %17, %15 : vector<8x128xf32>
    %19 = math.exp %18 : vector<8x128xf32>
    %20 = arith.mulf %16, %19 : vector<8x128xf32>
    %21 = arith.addf %14, %20 : vector<8x128xf32>
    %22 = arith.truncf %21 : vector<8x128xf32> to vector<8x128xbf16>
    %c0_14 = arith.constant 0 : index
    %c0_15 = arith.constant 0 : index
    %23 = vector.load %arg7[%c0_14, %c0_15] : memref<128x256xbf16, #tpu.memory_space<vmem>>, vector<128x256xbf16>
    %cst_16 = arith.constant dense<0.000000e+00> : vector<8x256xf32>
    %24 = tpu.matmul %22, %23, %cst_16 {dimension_numbers = #tpu.dot_dimension_numbers<[1], [0], [0], [1], [0, 0, 1, 1], [], []>} : vector<8x128xbf16>, vector<128x256xbf16>, vector<8x256xf32> -> vector<8x256xf32>
    %c0_17 = arith.constant 0 : index
    %c0_18 = arith.constant 0 : index
    %25 = vector.load %arg8[%c0_17, %c0_18] : memref<1x256xf32, #tpu.memory_space<vmem>>, vector<1x256xf32>
    %26 = vector.broadcast %25 : vector<1x256xf32> to vector<8x256xf32>
    %27 = arith.addf %24, %26 : vector<8x256xf32>
    %cst_19 = arith.constant 0.000000e+00 : f32
    %28 = vector.broadcast %cst_19 : f32 to vector<8x256xf32>
    %29 = arith.maximumf %27, %28 : vector<8x256xf32>
    %30 = arith.truncf %29 : vector<8x256xf32> to vector<8x256xbf16>
    %c0_20 = arith.constant 0 : index
    %c0_21 = arith.constant 0 : index
    %31 = vector.load %arg9[%c0_20, %c0_21] : memref<256x256xbf16, #tpu.memory_space<vmem>>, vector<256x256xbf16>
    %cst_22 = arith.constant dense<0.000000e+00> : vector<8x256xf32>
    %32 = tpu.matmul %30, %31, %cst_22 {dimension_numbers = #tpu.dot_dimension_numbers<[1], [0], [0], [1], [0, 0, 1, 1], [], []>} : vector<8x256xbf16>, vector<256x256xbf16>, vector<8x256xf32> -> vector<8x256xf32>
    %c0_23 = arith.constant 0 : index
    %c0_24 = arith.constant 0 : index
    %33 = vector.load %arg10[%c0_23, %c0_24] : memref<1x256xf32, #tpu.memory_space<vmem>>, vector<1x256xf32>
    %34 = vector.broadcast %33 : vector<1x256xf32> to vector<8x256xf32>
    %35 = arith.addf %32, %34 : vector<8x256xf32>
    %36 = arith.negf %35 : vector<8x256xf32>
    %37 = math.exp %36 : vector<8x256xf32>
    %cst_25 = arith.constant 1.000000e+00 : f32
    %38 = vector.broadcast %cst_25 : f32 to vector<8x256xf32>
    %39 = arith.addf %38, %37 : vector<8x256xf32>
    %40 = arith.divf %38, %39 : vector<8x256xf32>
    %c0_26 = arith.constant 0 : index
    %c0_27 = arith.constant 0 : index
    %41 = vector.load %arg11[%c0_26, %c0_27] : memref<8x256xf32, #tpu.memory_space<vmem>>, vector<8x256xf32>
    tpu.vector_store %arg11[%c0_26, %c0_27], %40 {strides = array<i32>} : memref<8x256xf32, #tpu.memory_space<vmem>>, vector<8x256xf32>,
    %c0_28 = arith.constant 0 : index
    %c0_29 = arith.constant 0 : index
    %42 = vector.load %arg12[%c0_28, %c0_29] : memref<8x256xf32, #tpu.memory_space<vmem>>, vector<8x256xf32>
    tpu.vector_store %arg12[%c0_28, %c0_29], %13 {strides = array<i32>} : memref<8x256xf32, #tpu.memory_space<vmem>>, vector<8x256xf32>,
    return
  }
  func.func @transform_0(%arg0: i32) -> (i32, i32) {
    %c0_i32 = arith.constant 0 : i32
    %c0_i32_0 = arith.constant 0 : i32
    return %arg0, %c0_i32 : i32, i32
  }
  func.func @transform_1(%arg0: i32) -> (i32, i32) {
    %c0_i32 = arith.constant 0 : i32
    %c0_i32_0 = arith.constant 0 : i32
    return %arg0, %c0_i32 : i32, i32
  }
  func.func @transform_2(%arg0: i32) -> (i32, i32) {
    %c0_i32 = arith.constant 0 : i32
    %c0_i32_0 = arith.constant 0 : i32
    %c0_i32_1 = arith.constant 0 : i32
    return %c0_i32, %c0_i32_0 : i32, i32
  }
  func.func @transform_3(%arg0: i32) -> (i32, i32) {
    %c0_i32 = arith.constant 0 : i32
    %c0_i32_0 = arith.constant 0 : i32
    %c0_i32_1 = arith.constant 0 : i32
    return %c0_i32, %c0_i32_0 : i32, i32
  }
  func.func @transform_4(%arg0: i32) -> (i32, i32) {
    %c0_i32 = arith.constant 0 : i32
    %c0_i32_0 = arith.constant 0 : i32
    %c0_i32_1 = arith.constant 0 : i32
    return %c0_i32, %c0_i32_0 : i32, i32
  }
  func.func @transform_5(%arg0: i32) -> (i32, i32) {
    %c0_i32 = arith.constant 0 : i32
    %c0_i32_0 = arith.constant 0 : i32
    %c0_i32_1 = arith.constant 0 : i32
    return %c0_i32, %c0_i32_0 : i32, i32
  }
  func.func @transform_6(%arg0: i32) -> (i32, i32) {
    %c0_i32 = arith.constant 0 : i32
    %c0_i32_0 = arith.constant 0 : i32
    %c0_i32_1 = arith.constant 0 : i32
    return %c0_i32, %c0_i32_0 : i32, i32
  }
  func.func @transform_7(%arg0: i32) -> (i32, i32) {
    %c0_i32 = arith.constant 0 : i32
    %c0_i32_0 = arith.constant 0 : i32
    %c0_i32_1 = arith.constant 0 : i32
    return %c0_i32, %c0_i32_0 : i32, i32
  }
  func.func @transform_8(%arg0: i32) -> (i32, i32) {
    %c0_i32 = arith.constant 0 : i32
    %c0_i32_0 = arith.constant 0 : i32
    %c0_i32_1 = arith.constant 0 : i32
    return %c0_i32, %c0_i32_0 : i32, i32
  }
  func.func @transform_9(%arg0: i32) -> (i32, i32) {
    %c0_i32 = arith.constant 0 : i32
    %c0_i32_0 = arith.constant 0 : i32
    %c0_i32_1 = arith.constant 0 : i32
    return %c0_i32, %c0_i32_0 : i32, i32
  }
  func.func @transform_10(%arg0: i32) -> (i32, i32) {
    %c0_i32 = arith.constant 0 : i32
    %c0_i32_0 = arith.constant 0 : i32
    return %arg0, %c0_i32 : i32, i32
  }
  func.func @transform_11(%arg0: i32) -> (i32, i32) {
    %c0_i32 = arith.constant 0 : i32
    %c0_i32_0 = arith.constant 0 : i32
    return %arg0, %c0_i32 : i32, i32
  }
}

</mosaic_0001>

<llo_original>
// kernel: vae_forward.1
$region0: #{vae_forward.1}
  #allocation0 [shape = 'u32[]', space=smem, size = 0x4, offset = 0x4, fixed_abs, tag = 'smem constant byte address 0x4 - core index']
  #allocation1 [shape = 'u32[72,128]{1,0:T(1,128)}', space=vmem, size = 0x9000, scoped, tag = 'internal scratch']
  %s0 = inlined_call_operand.vmem [shape: bf16[8,256], index: 0, kind: input, shape index: {}]
  %s1 = inlined_call_operand.vmem [shape: f32[8,128], index: 1, kind: input, shape index: {}]
  %s2 = inlined_call_operand.vmem [shape: bf16[256,256], index: 2, kind: input, shape index: {}]
  %s3 = inlined_call_operand.vmem [shape: f32[1,256], index: 3, kind: input, shape index: {}]
  %s4 = inlined_call_operand.vmem [shape: bf16[256,256], index: 4, kind: input, shape index: {}]
  %s5 = inlined_call_operand.vmem [shape: f32[1,256], index: 5, kind: input, shape index: {}]
  %s6 = inlined_call_operand.vmem [shape: bf16[128,256], index: 6, kind: input, shape index: {}]
  %s7 = inlined_call_operand.vmem [shape: f32[1,256], index: 7, kind: input, shape index: {}]
  %s8 = inlined_call_operand.vmem [shape: bf16[256,256], index: 8, kind: input, shape index: {}]
  %s9 = inlined_call_operand.vmem [shape: f32[1,256], index: 9, kind: input, shape index: {}]
  %s10 = inlined_call_operand.vmem [shape: f32[8,256], index: 10, kind: output, shape index: {0}]
  %s11 = inlined_call_operand.vmem [shape: f32[8,256], index: 11, kind: output, shape index: {1}]
  %12 = xla_tuple %s10, %s11
  %s13 = sld [smem:[#allocation0]]
  $region58: #{vae_forward.1} parent=0
    _
  %s15 = ssub.s32 1, %s13
  %s16 = scalar_select 0, %s15, %s13
  // Predicated region
  $region2: #{vae_forward.1} parent=0 // pred_check
    _
  $region3: #{vae_forward.1} parent=0 // pred_check_branch
    %18 = sbr.rel (0) target = $region5
  $region4: #{vae_forward.1} parent=0 // pred_region
    _
  $region5: #{vae_forward.1} parent=0 // pred_fallthru
    _
  // Predicated region
  $region6: #{vae_forward.1} parent=0 // pred_check
    _
  $region7: #{vae_forward.1} parent=0 // pred_check_branch
    %20 = sbr.rel (0) target = $region9
  $region8: #{vae_forward.1} parent=0 // pred_region
    _
  $region9: #{vae_forward.1} parent=0 // pred_fallthru
    _
  // Predicated region
  $region10: #{vae_forward.1} parent=0 // pred_check
    _
  $region11: #{vae_forward.1} parent=0 // pred_check_branch
    %22 = sbr.rel (0) target = $region13
  $region12: #{vae_forward.1} parent=0 // pred_region
    _
  $region13: #{vae_forward.1} parent=0 // pred_fallthru
    _
  // Predicated region
  $region14: #{vae_forward.1} parent=0 // pred_check
    _
  $region15: #{vae_forward.1} parent=0 // pred_check_branch
    %24 = sbr.rel (0) target = $region17
  $region16: #{vae_forward.1} parent=0 // pred_region
    _
  $region17: #{vae_forward.1} parent=0 // pred_fallthru
    _
  // Predicated region
  $region18: #{vae_forward.1} parent=0 // pred_check
    _
  $region19: #{vae_forward.1} parent=0 // pred_check_branch
    %26 = sbr.rel (0) target = $region21
  $region20: #{vae_forward.1} parent=0 // pred_region
    _
  $region21: #{vae_forward.1} parent=0 // pred_fallthru
    _
  // Predicated region
  $region22: #{vae_forward.1} parent=0 // pred_check
    _
  $region23: #{vae_forward.1} parent=0 // pred_check_branch
    %28 = sbr.rel (0) target = $region25
  $region24: #{vae_forward.1} parent=0 // pred_region
    _
  $region25: #{vae_forward.1} parent=0 // pred_fallthru
    _
  // Predicated region
  $region26: #{vae_forward.1} parent=0 // pred_check
    _
  $region27: #{vae_forward.1} parent=0 // pred_check_branch
    %30 = sbr.rel (0) target = $region29
  $region28: #{vae_forward.1} parent=0 // pred_region
    _
  $region29: #{vae_forward.1} parent=0 // pred_fallthru
    _
  // Predicated region
  $region30: #{vae_forward.1} parent=0 // pred_check
    _
  $region31: #{vae_forward.1} parent=0 // pred_check_branch
    %32 = sbr.rel (0) target = $region33
  $region32: #{vae_forward.1} parent=0 // pred_region
    _
  $region33: #{vae_forward.1} parent=0 // pred_fallthru
    _
  // Predicated region
  $region34: #{vae_forward.1} parent=0 // pred_check
    _
  $region35: #{vae_forward.1} parent=0 // pred_check_branch
    %34 = sbr.rel (0) target = $region37
  $region36: #{vae_forward.1} parent=0 // pred_region
    _
  $region37: #{vae_forward.1} parent=0 // pred_fallthru
    _
  // Predicated region
  $region38: #{vae_forward.1} parent=0 // pred_check
    _
  $region39: #{vae_forward.1} parent=0 // pred_check_branch
    %36 = sbr.rel (0) target = $region41
  $region40: #{vae_forward.1} parent=0 // pred_region
    _
  $region41: #{vae_forward.1} parent=0 // pred_fallthru
    _
  %v37 = vld [vmem:[%s0] sm:$0xff]
  %v38 = vld [vmem:[%s2] sm:$0xff]
  %v39 = vld [vmem:[%s2 + $0x8] sm:$0xff]
  %v40 = vld [vmem:[%s2 + $0x10] sm:$0xff]
  %v41 = vld [vmem:[%s2 + $0x18] sm:$0xff]
  %v42 = vld [vmem:[%s2 + $0x20] sm:$0xff]
  %v43 = vld [vmem:[%s2 + $0x28] sm:$0xff]
  %v44 = vld [vmem:[%s2 + $0x30] sm:$0xff]
  %v45 = vld [vmem:[%s2 + $0x38] sm:$0xff]
  %v46 = vld [vmem:[%s2 + $0x40] sm:$0xff]
  %v47 = vld [vmem:[%s2 + $0x48] sm:$0xff]
  %v48 = vld [vmem:[%s2 + $0x50] sm:$0xff]
  %v49 = vld [vmem:[%s2 + $0x58] sm:$0xff]
  %v50 = vld [vmem:[%s2 + $0x60] sm:$0xff]
  %v51 = vld [vmem:[%s2 + $0x68] sm:$0xff]
  %v52 = vld [vmem:[%s2 + $0x70] sm:$0xff]
  %v53 = vld [vmem:[%s2 + $0x78] sm:$0xff]
  %v54 = vld [vmem:[%s2 + $0x80] sm:$0xff]
  %v55 = vld [vmem:[%s2 + $0x88] sm:$0xff]
  %v56 = vld [vmem:[%s2 + $0x90] sm:$0xff]
  %v57 = vld [vmem:[%s2 + $0x98] sm:$0xff]
  %v58 = vld [vmem:[%s2 + $0xa0] sm:$0xff]
  %v59 = vld [vmem:[%s2 + $0xa8] sm:$0xff]
  %v60 = vld [vmem:[%s2 + $0xb0] sm:$0xff]
  %v61 = vld [vmem:[%s2 + $0xb8] sm:$0xff]
  %v62 = vld [vmem:[%s2 + $0xc0] sm:$0xff]
  %v63 = vld [vmem:[%s2 + $0xc8] sm:$0xff]
  %v64 = vld [vmem:[%s2 + $0xd0] sm:$0xff]
  %v65 = vld [vmem:[%s2 + $0xd8] sm:$0xff]
  %v66 = vld [vmem:[%s2 + $0xe0] sm:$0xff]
  %v67 = vld [vmem:[%s2 + $0xe8] sm:$0xff]
  %v68 = vld [vmem:[%s2 + $0xf0] sm:$0xff]
  %v69 = vld [vmem:[%s2 + $0xf8] sm:$0xff]
  %v70 = vld [vmem:[%s3] sm:$0x3]
  %v72 = vperm.slane %v70, 0
  %v73 = vperm.slane %v70, 1
  %v77 = vunpack.c.l.b16 %v37
  %v78 = vunpack.c.h.b16 %v37
  %v79 = vpack.c.b16 %v77, %v77
  %v80 = vpack.c.b16 %v78, %v78
  %v115 = vunpack.c.l.b16 %v38
  %v116 = vunpack.c.h.b16 %v38
  %v117 = vunpack.c.l.b16 %v39
  %v118 = vunpack.c.h.b16 %v39
  %v119 = vunpack.c.l.b16 %v40
  %v120 = vunpack.c.h.b16 %v40
  %v121 = vunpack.c.l.b16 %v41
  %v122 = vunpack.c.h.b16 %v41
  %v123 = vunpack.c.l.b16 %v42
  %v124 = vunpack.c.h.b16 %v42
  %v125 = vunpack.c.l.b16 %v43
  %v126 = vunpack.c.h.b16 %v43
  %v127 = vunpack.c.l.b16 %v44
  %v128 = vunpack.c.h.b16 %v44
  %v129 = vunpack.c.l.b16 %v45
  %v130 = vunpack.c.h.b16 %v45
  %v131 = vunpack.c.l.b16 %v46
  %v132 = vunpack.c.h.b16 %v46
  %v133 = vunpack.c.l.b16 %v47
  %v134 = vunpack.c.h.b16 %v47
  %v135 = vunpack.c.l.b16 %v48
  %v136 = vunpack.c.h.b16 %v48
  %v137 = vunpack.c.l.b16 %v49
  %v138 = vunpack.c.h.b16 %v49
  %v139 = vunpack.c.l.b16 %v50
  %v140 = vunpack.c.h.b16 %v50
  %v141 = vunpack.c.l.b16 %v51
  %v142 = vunpack.c.h.b16 %v51
  %v143 = vunpack.c.l.b16 %v52
  %v144 = vunpack.c.h.b16 %v52
  %v145 = vunpack.c.l.b16 %v53
  %v146 = vunpack.c.h.b16 %v53
  %v147 = vunpack.c.l.b16 %v54
  %v148 = vunpack.c.h.b16 %v54
  %v149 = vunpack.c.l.b16 %v55
  %v150 = vunpack.c.h.b16 %v55
  %v151 = vunpack.c.l.b16 %v56
  %v152 = vunpack.c.h.b16 %v56
  %v153 = vunpack.c.l.b16 %v57
  %v154 = vunpack.c.h.b16 %v57
  %v155 = vunpack.c.l.b16 %v58
  %v156 = vunpack.c.h.b16 %v58
  %v157 = vunpack.c.l.b16 %v59
  %v158 = vunpack.c.h.b16 %v59
  %v159 = vunpack.c.l.b16 %v60
  %v160 = vunpack.c.h.b16 %v60
  %v161 = vunpack.c.l.b16 %v61
  %v162 = vunpack.c.h.b16 %v61
  %v163 = vunpack.c.l.b16 %v62
  %v164 = vunpack.c.h.b16 %v62
  %v165 = vunpack.c.l.b16 %v63
  %v166 = vunpack.c.h.b16 %v63
  %v167 = vunpack.c.l.b16 %v64
  %v168 = vunpack.c.h.b16 %v64
  %v169 = vunpack.c.l.b16 %v65
  %v170 = vunpack.c.h.b16 %v65
  %v171 = vunpack.c.l.b16 %v66
  %v172 = vunpack.c.h.b16 %v66
  %v173 = vunpack.c.l.b16 %v67
  %v174 = vunpack.c.h.b16 %v67
  %v175 = vunpack.c.l.b16 %v68
  %v176 = vunpack.c.h.b16 %v68
  %v177 = vunpack.c.l.b16 %v69
  %v178 = vunpack.c.h.b16 %v69
  %v179 = vpack.c.b16 %v117, %v115
  %v180 = vpack.c.b16 %v118, %v116
  %v181 = vpack.c.b16 %v121, %v119
  %v182 = vpack.c.b16 %v122, %v120
  %v183 = vpack.c.b16 %v125, %v123
  %v184 = vpack.c.b16 %v126, %v124
  %v185 = vpack.c.b16 %v129, %v127
  %v186 = vpack.c.b16 %v130, %v128
  %v187 = vpack.c.b16 %v133, %v131
  %v188 = vpack.c.b16 %v134, %v132
  %v189 = vpack.c.b16 %v137, %v135
  %v190 = vpack.c.b16 %v138, %v136
  %v191 = vpack.c.b16 %v141, %v139
  %v192 = vpack.c.b16 %v142, %v140
  %v193 = vpack.c.b16 %v145, %v143
  %v194 = vpack.c.b16 %v146, %v144
  %v195 = vpack.c.b16 %v149, %v147
  %v196 = vpack.c.b16 %v150, %v148
  %v197 = vpack.c.b16 %v153, %v151
  %v198 = vpack.c.b16 %v154, %v152
  %v199 = vpack.c.b16 %v157, %v155
  %v200 = vpack.c.b16 %v158, %v156
  %v201 = vpack.c.b16 %v161, %v159
  %v202 = vpack.c.b16 %v162, %v160
  %v203 = vpack.c.b16 %v165, %v163
  %v204 = vpack.c.b16 %v166, %v164
  %v205 = vpack.c.b16 %v169, %v167
  %v206 = vpack.c.b16 %v170, %v168
  %v207 = vpack.c.b16 %v173, %v171
  %v208 = vpack.c.b16 %v174, %v172
  %v209 = vpack.c.b16 %v177, %v175
  %v210 = vpack.c.b16 %v178, %v176
  %243 = vmatpush.bf16.msra.mxu0 %v193
  %244 = vmatpush.bf16.msra.mxu0 %v191
  %245 = vmatpush.bf16.msra.mxu0 %v189
  %246 = vmatpush.bf16.msra.mxu0 %v187
  %247 = vmatpush.bf16.msra.mxu0 %v185
  %248 = vmatpush.bf16.msra.mxu0 %v183
  %249 = vmatpush.bf16.msra.mxu0 %v181
  %250 = vmatpush.bf16.msra.mxu0 %v179
  %251 = vmatmul.bf16.gmra.mxu0 %v79
  %v252 = vpop.f32.mrf.mxu0
  %v253 = vadd.f32 %v72, %v252
  %v254 = vpop.f32.mrf.mxu0
  %255 = vdwg.mxu0
  %256 = vmatpush.bf16.msra.mxu0 %v209
  %257 = vmatpush.bf16.msra.mxu0 %v207
  %258 = vmatpush.bf16.msra.mxu0 %v205
  %259 = vmatpush.bf16.msra.mxu0 %v203
  %260 = vmatpush.bf16.msra.mxu0 %v201
  %261 = vmatpush.bf16.msra.mxu0 %v199
  %262 = vmatpush.bf16.msra.mxu0 %v197
  %263 = vmatpush.bf16.msra.mxu0 %v195
  %264 = vmatmul.bf16.gmra.mxu0 %v80
  %v265 = vpop.f32.mrf.mxu0
  %v266 = vadd.f32 %v253, %v265
  %v267 = vpop.f32.mrf.mxu0
  %268 = vdwg.mxu0
  %269 = vmatpush.bf16.msra.mxu0 %v194
  %270 = vmatpush.bf16.msra.mxu0 %v192
  %271 = vmatpush.bf16.msra.mxu0 %v190
  %272 = vmatpush.bf16.msra.mxu0 %v188
  %273 = vmatpush.bf16.msra.mxu0 %v186
  %274 = vmatpush.bf16.msra.mxu0 %v184
  %275 = vmatpush.bf16.msra.mxu0 %v182
  %276 = vmatpush.bf16.msra.mxu0 %v180
  %277 = vmatmul.bf16.gmra.mxu0 %v79
  %v278 = vpop.f32.mrf.mxu0
  %v279 = vadd.f32 %v73, %v278
  %v280 = vpop.f32.mrf.mxu0
  %281 = vdwg.mxu0
  %282 = vmatpush.bf16.msra.mxu0 %v210
  %283 = vmatpush.bf16.msra.mxu0 %v208
  %284 = vmatpush.bf16.msra.mxu0 %v206
  %285 = vmatpush.bf16.msra.mxu0 %v204
  %286 = vmatpush.bf16.msra.mxu0 %v202
  %287 = vmatpush.bf16.msra.mxu0 %v200
  %288 = vmatpush.bf16.msra.mxu0 %v198
  %289 = vmatpush.bf16.msra.mxu0 %v196
  %290 = vmatmul.bf16.gmra.mxu0 %v80
  %v291 = vpop.f32.mrf.mxu0
  %v292 = vadd.f32 %v279, %v291
  %v293 = vpop.f32.mrf.mxu0
  %294 = vdwg.mxu0
  %v295 = vmax.f32 %v266, 0.0
  %v296 = vmax.f32 %v292, 0.0
  %v297 = vpack.c.bf16 %v295, %v295
  %v298 = vpack.c.bf16 %v296, %v296
  %v299 = vld [vmem:[%s4] sm:$0xff]
  %v300 = vld [vmem:[%s4 + $0x8] sm:$0xff]
  %v301 = vld [vmem:[%s4 + $0x10] sm:$0xff]
  %v302 = vld [vmem:[%s4 + $0x18] sm:$0xff]
  %v303 = vld [vmem:[%s4 + $0x20] sm:$0xff]
  %v304 = vld [vmem:[%s4 + $0x28] sm:$0xff]
  %v305 = vld [vmem:[%s4 + $0x30] sm:$0xff]
  %v306 = vld [vmem:[%s4 + $0x38] sm:$0xff]
  %v307 = vld [vmem:[%s4 + $0x40] sm:$0xff]
  %v308 = vld [vmem:[%s4 + $0x48] sm:$0xff]
  %v309 = vld [vmem:[%s4 + $0x50] sm:$0xff]
  %v310 = vld [vmem:[%s4 + $0x58] sm:$0xff]
  %v311 = vld [vmem:[%s4 + $0x60] sm:$0xff]
  %v312 = vld [vmem:[%s4 + $0x68] sm:$0xff]
  %v313 = vld [vmem:[%s4 + $0x70] sm:$0xff]
  %v314 = vld [vmem:[%s4 + $0x78] sm:$0xff]
  %v315 = vld [vmem:[%s4 + $0x80] sm:$0xff]
  %v316 = vld [vmem:[%s4 + $0x88] sm:$0xff]
  %v317 = vld [vmem:[%s4 + $0x90] sm:$0xff]
  %v318 = vld [vmem:[%s4 + $0x98] sm:$0xff]
  %v319 = vld [vmem:[%s4 + $0xa0] sm:$0xff]
  %v320 = vld [vmem:[%s4 + $0xa8] sm:$0xff]
  %v321 = vld [vmem:[%s4 + $0xb0] sm:$0xff]
  %v322 = vld [vmem:[%s4 + $0xb8] sm:$0xff]
  %v323 = vld [vmem:[%s4 + $0xc0] sm:$0xff]
  %v324 = vld [vmem:[%s4 + $0xc8] sm:$0xff]
  %v325 = vld [vmem:[%s4 + $0xd0] sm:$0xff]
  %v326 = vld [vmem:[%s4 + $0xd8] sm:$0xff]
  %v327 = vld [vmem:[%s4 + $0xe0] sm:$0xff]
  %v328 = vld [vmem:[%s4 + $0xe8] sm:$0xff]
  %v329 = vld [vmem:[%s4 + $0xf0] sm:$0xff]
  %v330 = vld [vmem:[%s4 + $0xf8] sm:$0xff]
  %v331 = vld [vmem:[%s5] sm:$0x3]
  %v333 = vperm.slane %v331, 0
  %v334 = vperm.slane %v331, 1
  %v369 = vunpack.c.l.b16 %v299
  %v370 = vunpack.c.h.b16 %v299
  %v371 = vunpack.c.l.b16 %v300
  %v372 = vunpack.c.h.b16 %v300
  %v373 = vunpack.c.l.b16 %v301
  %v374 = vunpack.c.h.b16 %v301
  %v375 = vunpack.c.l.b16 %v302
  %v376 = vunpack.c.h.b16 %v302
  %v377 = vunpack.c.l.b16 %v303
  %v378 = vunpack.c.h.b16 %v303
  %v379 = vunpack.c.l.b16 %v304
  %v380 = vunpack.c.h.b16 %v304
  %v381 = vunpack.c.l.b16 %v305
  %v382 = vunpack.c.h.b16 %v305
  %v383 = vunpack.c.l.b16 %v306
  %v384 = vunpack.c.h.b16 %v306
  %v385 = vunpack.c.l.b16 %v307
  %v386 = vunpack.c.h.b16 %v307
  %v387 = vunpack.c.l.b16 %v308
  %v388 = vunpack.c.h.b16 %v308
  %v389 = vunpack.c.l.b16 %v309
  %v390 = vunpack.c.h.b16 %v309
  %v391 = vunpack.c.l.b16 %v310
  %v392 = vunpack.c.h.b16 %v310
  %v393 = vunpack.c.l.b16 %v311
  %v394 = vunpack.c.h.b16 %v311
  %v395 = vunpack.c.l.b16 %v312
  %v396 = vunpack.c.h.b16 %v312
  %v397 = vunpack.c.l.b16 %v313
  %v398 = vunpack.c.h.b16 %v313
  %v399 = vunpack.c.l.b16 %v314
  %v400 = vunpack.c.h.b16 %v314
  %v401 = vunpack.c.l.b16 %v315
  %v402 = vunpack.c.h.b16 %v315
  %v403 = vunpack.c.l.b16 %v316
  %v404 = vunpack.c.h.b16 %v316
  %v405 = vunpack.c.l.b16 %v317
  %v406 = vunpack.c.h.b16 %v317
  %v407 = vunpack.c.l.b16 %v318
  %v408 = vunpack.c.h.b16 %v318
  %v409 = vunpack.c.l.b16 %v319
  %v410 = vunpack.c.h.b16 %v319
  %v411 = vunpack.c.l.b16 %v320
  %v412 = vunpack.c.h.b16 %v320
  %v413 = vunpack.c.l.b16 %v321
  %v414 = vunpack.c.h.b16 %v321
  %v415 = vunpack.c.l.b16 %v322
  %v416 = vunpack.c.h.b16 %v322
  %v417 = vunpack.c.l.b16 %v323
  %v418 = vunpack.c.h.b16 %v323
  %v419 = vunpack.c.l.b16 %v324
  %v420 = vunpack.c.h.b16 %v324
  %v421 = vunpack.c.l.b16 %v325
  %v422 = vunpack.c.h.b16 %v325
  %v423 = vunpack.c.l.b16 %v326
  %v424 = vunpack.c.h.b16 %v326
  %v425 = vunpack.c.l.b16 %v327
  %v426 = vunpack.c.h.b16 %v327
  %v427 = vunpack.c.l.b16 %v328
  %v428 = vunpack.c.h.b16 %v328
  %v429 = vunpack.c.l.b16 %v329
  %v430 = vunpack.c.h.b16 %v329
  %v431 = vunpack.c.l.b16 %v330
  %v432 = vunpack.c.h.b16 %v330
  %v433 = vpack.c.b16 %v371, %v369
  %v434 = vpack.c.b16 %v372, %v370
  %v435 = vpack.c.b16 %v375, %v373
  %v436 = vpack.c.b16 %v376, %v374
  %v437 = vpack.c.b16 %v379, %v377
  %v438 = vpack.c.b16 %v380, %v378
  %v439 = vpack.c.b16 %v383, %v381
  %v440 = vpack.c.b16 %v384, %v382
  %v441 = vpack.c.b16 %v387, %v385
  %v442 = vpack.c.b16 %v388, %v386
  %v443 = vpack.c.b16 %v391, %v389
  %v444 = vpack.c.b16 %v392, %v390
  %v445 = vpack.c.b16 %v395, %v393
  %v446 = vpack.c.b16 %v396, %v394
  %v447 = vpack.c.b16 %v399, %v397
  %v448 = vpack.c.b16 %v400, %v398
  %v449 = vpack.c.b16 %v403, %v401
  %v450 = vpack.c.b16 %v404, %v402
  %v451 = vpack.c.b16 %v407, %v405
  %v452 = vpack.c.b16 %v408, %v406
  %v453 = vpack.c.b16 %v411, %v409
  %v454 = vpack.c.b16 %v412, %v410
  %v455 = vpack.c.b16 %v415, %v413
  %v456 = vpack.c.b16 %v416, %v414
  %v457 = vpack.c.b16 %v419, %v417
  %v458 = vpack.c.b16 %v420, %v418
  %v459 = vpack.c.b16 %v423, %v421
  %v460 = vpack.c.b16 %v424, %v422
  %v461 = vpack.c.b16 %v427, %v425
  %v462 = vpack.c.b16 %v428, %v426
  %v463 = vpack.c.b16 %v431, %v429
  %v464 = vpack.c.b16 %v432, %v430
  %497 = vmatpush.bf16.msra.mxu0 %v447
  %498 = vmatpush.bf16.msra.mxu0 %v445
  %499 = vmatpush.bf16.msra.mxu0 %v443
  %500 = vmatpush.bf16.msra.mxu0 %v441
  %501 = vmatpush.bf16.msra.mxu0 %v439
  %502 = vmatpush.bf16.msra.mxu0 %v437
  %503 = vmatpush.bf16.msra.mxu0 %v435
  %504 = vmatpush.bf16.msra.mxu0 %v433
  %505 = vmatmul.bf16.gmra.mxu0 %v297
  %v506 = vpop.f32.mrf.mxu0
  %v507 = vadd.f32 %v333, %v506
  %v508 = vpop.f32.mrf.mxu0
  %509 = vdwg.mxu0
  %510 = vmatpush.bf16.msra.mxu0 %v463
  %511 = vmatpush.bf16.msra.mxu0 %v461
  %512 = vmatpush.bf16.msra.mxu0 %v459
  %513 = vmatpush.bf16.msra.mxu0 %v457
  %514 = vmatpush.bf16.msra.mxu0 %v455
  %515 = vmatpush.bf16.msra.mxu0 %v453
  %516 = vmatpush.bf16.msra.mxu0 %v451
  %517 = vmatpush.bf16.msra.mxu0 %v449
  %518 = vmatmul.bf16.gmra.mxu0 %v298
  %v519 = vpop.f32.mrf.mxu0
  %v520 = vadd.f32 %v507, %v519
  %v521 = vpop.f32.mrf.mxu0
  %522 = vdwg.mxu0
  %523 = vmatpush.bf16.msra.mxu0 %v448
  %524 = vmatpush.bf16.msra.mxu0 %v446
  %525 = vmatpush.bf16.msra.mxu0 %v444
  %526 = vmatpush.bf16.msra.mxu0 %v442
  %527 = vmatpush.bf16.msra.mxu0 %v440
  %528 = vmatpush.bf16.msra.mxu0 %v438
  %529 = vmatpush.bf16.msra.mxu0 %v436
  %530 = vmatpush.bf16.msra.mxu0 %v434
  %531 = vmatmul.bf16.gmra.mxu0 %v297
  %v532 = vpop.f32.mrf.mxu0
  %v533 = vadd.f32 %v334, %v532
  %v534 = vpop.f32.mrf.mxu0
  %535 = vdwg.mxu0
  %536 = vmatpush.bf16.msra.mxu0 %v464
  %537 = vmatpush.bf16.msra.mxu0 %v462
  %538 = vmatpush.bf16.msra.mxu0 %v460
  %539 = vmatpush.bf16.msra.mxu0 %v458
  %540 = vmatpush.bf16.msra.mxu0 %v456
  %541 = vmatpush.bf16.msra.mxu0 %v454
  %542 = vmatpush.bf16.msra.mxu0 %v452
  %543 = vmatpush.bf16.msra.mxu0 %v450
  %544 = vmatmul.bf16.gmra.mxu0 %v298
  %v545 = vpop.f32.mrf.mxu0
  %v546 = vadd.f32 %v533, %v545
  %v547 = vpop.f32.mrf.mxu0
  %548 = vdwg.mxu0
  %v549 = vld [vmem:[%s1] sm:$0xff]
  %v550 = vmul.f32 %v546, 0.5
  %v551 = vmul.f32 %v550, 1.442695
  %v552 = vpow.pop %v551
  %v553 = vmul.f32 %v549, %v552
  %v554 = vadd.f32 %v520, %v553
  %v555 = vpack.c.bf16 %v554, %v554
  %v556 = vld [vmem:[%s6] sm:$0xff]
  %v557 = vld [vmem:[%s6 + $0x8] sm:$0xff]
  %v558 = vld [vmem:[%s6 + $0x10] sm:$0xff]
  %v559 = vld [vmem:[%s6 + $0x18] sm:$0xff]
  %v560 = vld [vmem:[%s6 + $0x20] sm:$0xff]
  %v561 = vld [vmem:[%s6 + $0x28] sm:$0xff]
  %v562 = vld [vmem:[%s6 + $0x30] sm:$0xff]
  %v563 = vld [vmem:[%s6 + $0x38] sm:$0xff]
  %v564 = vld [vmem:[%s6 + $0x40] sm:$0xff]
  %v565 = vld [vmem:[%s6 + $0x48] sm:$0xff]
  %v566 = vld [vmem:[%s6 + $0x50] sm:$0xff]
  %v567 = vld [vmem:[%s6 + $0x58] sm:$0xff]
  %v568 = vld [vmem:[%s6 + $0x60] sm:$0xff]
  %v569 = vld [vmem:[%s6 + $0x68] sm:$0xff]
  %v570 = vld [vmem:[%s6 + $0x70] sm:$0xff]
  %v571 = vld [vmem:[%s6 + $0x78] sm:$0xff]
  %v572 = vld [vmem:[%s7] sm:$0x3]
  %v574 = vperm.slane %v572, 0
  %v575 = vperm.slane %v572, 1
  %v594 = vunpack.c.l.b16 %v556
  %v595 = vunpack.c.h.b16 %v556
  %v596 = vunpack.c.l.b16 %v557
  %v597 = vunpack.c.h.b16 %v557
  %v598 = vunpack.c.l.b16 %v558
  %v599 = vunpack.c.h.b16 %v558
  %v600 = vunpack.c.l.b16 %v559
  %v601 = vunpack.c.h.b16 %v559
  %v602 = vunpack.c.l.b16 %v560
  %v603 = vunpack.c.h.b16 %v560
  %v604 = vunpack.c.l.b16 %v561
  %v605 = vunpack.c.h.b16 %v561
  %v606 = vunpack.c.l.b16 %v562
  %v607 = vunpack.c.h.b16 %v562
  %v608 = vunpack.c.l.b16 %v563
  %v609 = vunpack.c.h.b16 %v563
  %v610 = vunpack.c.l.b16 %v564
  %v611 = vunpack.c.h.b16 %v564
  %v612 = vunpack.c.l.b16 %v565
  %v613 = vunpack.c.h.b16 %v565
  %v614 = vunpack.c.l.b16 %v566
  %v615 = vunpack.c.h.b16 %v566
  %v616 = vunpack.c.l.b16 %v567
  %v617 = vunpack.c.h.b16 %v567
  %v618 = vunpack.c.l.b16 %v568
  %v619 = vunpack.c.h.b16 %v568
  %v620 = vunpack.c.l.b16 %v569
  %v621 = vunpack.c.h.b16 %v569
  %v622 = vunpack.c.l.b16 %v570
  %v623 = vunpack.c.h.b16 %v570
  %v624 = vunpack.c.l.b16 %v571
  %v625 = vunpack.c.h.b16 %v571
  %v626 = vpack.c.b16 %v596, %v594
  %v627 = vpack.c.b16 %v597, %v595
  %v628 = vpack.c.b16 %v600, %v598
  %v629 = vpack.c.b16 %v601, %v599
  %v630 = vpack.c.b16 %v604, %v602
  %v631 = vpack.c.b16 %v605, %v603
  %v632 = vpack.c.b16 %v608, %v606
  %v633 = vpack.c.b16 %v609, %v607
  %v634 = vpack.c.b16 %v612, %v610
  %v635 = vpack.c.b16 %v613, %v611
  %v636 = vpack.c.b16 %v616, %v614
  %v637 = vpack.c.b16 %v617, %v615
  %v638 = vpack.c.b16 %v620, %v618
  %v639 = vpack.c.b16 %v621, %v619
  %v640 = vpack.c.b16 %v624, %v622
  %v641 = vpack.c.b16 %v625, %v623
  %658 = vmatpush.bf16.msra.mxu0 %v640
  %659 = vmatpush.bf16.msra.mxu0 %v638
  %660 = vmatpush.bf16.msra.mxu0 %v636
  %661 = vmatpush.bf16.msra.mxu0 %v634
  %662 = vmatpush.bf16.msra.mxu0 %v632
  %663 = vmatpush.bf16.msra.mxu0 %v630
  %664 = vmatpush.bf16.msra.mxu0 %v628
  %665 = vmatpush.bf16.msra.mxu0 %v626
  %666 = vmatmul.bf16.gmra.mxu0 %v555
  %v667 = vpop.f32.mrf.mxu0
  %v668 = vadd.f32 %v574, %v667
  %v669 = vpop.f32.mrf.mxu0
  %670 = vdwg.mxu0
  %671 = vmatpush.bf16.msra.mxu0 %v641
  %672 = vmatpush.bf16.msra.mxu0 %v639
  %673 = vmatpush.bf16.msra.mxu0 %v637
  %674 = vmatpush.bf16.msra.mxu0 %v635
  %675 = vmatpush.bf16.msra.mxu0 %v633
  %676 = vmatpush.bf16.msra.mxu0 %v631
  %677 = vmatpush.bf16.msra.mxu0 %v629
  %678 = vmatpush.bf16.msra.mxu0 %v627
  %679 = vmatmul.bf16.gmra.mxu0 %v555
  %v680 = vpop.f32.mrf.mxu0
  %v681 = vadd.f32 %v575, %v680
  %v682 = vpop.f32.mrf.mxu0
  %683 = vdwg.mxu0
  %v684 = vmax.f32 %v668, 0.0
  %v685 = vmax.f32 %v681, 0.0
  %v686 = vpack.c.bf16 %v684, %v684
  %v687 = vpack.c.bf16 %v685, %v685
  %v688 = vld [vmem:[%s8] sm:$0xff]
  %v689 = vld [vmem:[%s8 + $0x8] sm:$0xff]
  %v690 = vld [vmem:[%s8 + $0x10] sm:$0xff]
  %v691 = vld [vmem:[%s8 + $0x18] sm:$0xff]
  %v692 = vld [vmem:[%s8 + $0x20] sm:$0xff]
  %v693 = vld [vmem:[%s8 + $0x28] sm:$0xff]
  %v694 = vld [vmem:[%s8 + $0x30] sm:$0xff]
  %v695 = vld [vmem:[%s8 + $0x38] sm:$0xff]
  %v696 = vld [vmem:[%s8 + $0x40] sm:$0xff]
  %v697 = vld [vmem:[%s8 + $0x48] sm:$0xff]
  %v698 = vld [vmem:[%s8 + $0x50] sm:$0xff]
  %v699 = vld [vmem:[%s8 + $0x58] sm:$0xff]
  %v700 = vld [vmem:[%s8 + $0x60] sm:$0xff]
  %v701 = vld [vmem:[%s8 + $0x68] sm:$0xff]
  %v702 = vld [vmem:[%s8 + $0x70] sm:$0xff]
  %v703 = vld [vmem:[%s8 + $0x78] sm:$0xff]
  %v704 = vld [vmem:[%s8 + $0x80] sm:$0xff]
  %v705 = vld [vmem:[%s8 + $0x88] sm:$0xff]
  %v706 = vld [vmem:[%s8 + $0x90] sm:$0xff]
  %v707 = vld [vmem:[%s8 + $0x98] sm:$0xff]
  %v708 = vld [vmem:[%s8 + $0xa0] sm:$0xff]
  %v709 = vld [vmem:[%s8 + $0xa8] sm:$0xff]
  %v710 = vld [vmem:[%s8 + $0xb0] sm:$0xff]
  %v711 = vld [vmem:[%s8 + $0xb8] sm:$0xff]
  %v712 = vld [vmem:[%s8 + $0xc0] sm:$0xff]
  %v713 = vld [vmem:[%s8 + $0xc8] sm:$0xff]
  %v714 = vld [vmem:[%s8 + $0xd0] sm:$0xff]
  %v715 = vld [vmem:[%s8 + $0xd8] sm:$0xff]
  %v716 = vld [vmem:[%s8 + $0xe0] sm:$0xff]
  %v717 = vld [vmem:[%s8 + $0xe8] sm:$0xff]
  %v718 = vld [vmem:[%s8 + $0xf0] sm:$0xff]
  %v719 = vld [vmem:[%s8 + $0xf8] sm:$0xff]
  %v720 = vld [vmem:[%s9] sm:$0x3]
  %v722 = vperm.slane %v720, 0
  %v723 = vperm.slane %v720, 1
  %v758 = vunpack.c.l.b16 %v688
  %v759 = vunpack.c.h.b16 %v688
  %v760 = vunpack.c.l.b16 %v689
  %v761 = vunpack.c.h.b16 %v689
  %v762 = vunpack.c.l.b16 %v690
  %v763 = vunpack.c.h.b16 %v690
  %v764 = vunpack.c.l.b16 %v691
  %v765 = vunpack.c.h.b16 %v691
  %v766 = vunpack.c.l.b16 %v692
  %v767 = vunpack.c.h.b16 %v692
  %v768 = vunpack.c.l.b16 %v693
  %v769 = vunpack.c.h.b16 %v693
  %v770 = vunpack.c.l.b16 %v694
  %v771 = vunpack.c.h.b16 %v694
  %v772 = vunpack.c.l.b16 %v695
  %v773 = vunpack.c.h.b16 %v695
  %v774 = vunpack.c.l.b16 %v696
  %v775 = vunpack.c.h.b16 %v696
  %v776 = vunpack.c.l.b16 %v697
  %v777 = vunpack.c.h.b16 %v697
  %v778 = vunpack.c.l.b16 %v698
  %v779 = vunpack.c.h.b16 %v698
  %v780 = vunpack.c.l.b16 %v699
  %v781 = vunpack.c.h.b16 %v699
  %v782 = vunpack.c.l.b16 %v700
  %v783 = vunpack.c.h.b16 %v700
  %v784 = vunpack.c.l.b16 %v701
  %v785 = vunpack.c.h.b16 %v701
  %v786 = vunpack.c.l.b16 %v702
  %v787 = vunpack.c.h.b16 %v702
  %v788 = vunpack.c.l.b16 %v703
  %v789 = vunpack.c.h.b16 %v703
  %v790 = vunpack.c.l.b16 %v704
  %v791 = vunpack.c.h.b16 %v704
  %v792 = vunpack.c.l.b16 %v705
  %v793 = vunpack.c.h.b16 %v705
  %v794 = vunpack.c.l.b16 %v706
  %v795 = vunpack.c.h.b16 %v706
  %v796 = vunpack.c.l.b16 %v707
  %v797 = vunpack.c.h.b16 %v707
  %v798 = vunpack.c.l.b16 %v708
  %v799 = vunpack.c.h.b16 %v708
  %v800 = vunpack.c.l.b16 %v709
  %v801 = vunpack.c.h.b16 %v709
  %v802 = vunpack.c.l.b16 %v710
  %v803 = vunpack.c.h.b16 %v710
  %v804 = vunpack.c.l.b16 %v711
  %v805 = vunpack.c.h.b16 %v711
  %v806 = vunpack.c.l.b16 %v712
  %v807 = vunpack.c.h.b16 %v712
  %v808 = vunpack.c.l.b16 %v713
  %v809 = vunpack.c.h.b16 %v713
  %v810 = vunpack.c.l.b16 %v714
  %v811 = vunpack.c.h.b16 %v714
  %v812 = vunpack.c.l.b16 %v715
  %v813 = vunpack.c.h.b16 %v715
  %v814 = vunpack.c.l.b16 %v716
  %v815 = vunpack.c.h.b16 %v716
  %v816 = vunpack.c.l.b16 %v717
  %v817 = vunpack.c.h.b16 %v717
  %v818 = vunpack.c.l.b16 %v718
  %v819 = vunpack.c.h.b16 %v718
  %v820 = vunpack.c.l.b16 %v719
  %v821 = vunpack.c.h.b16 %v719
  %v822 = vpack.c.b16 %v760, %v758
  %v823 = vpack.c.b16 %v761, %v759
  %v824 = vpack.c.b16 %v764, %v762
  %v825 = vpack.c.b16 %v765, %v763
  %v826 = vpack.c.b16 %v768, %v766
  %v827 = vpack.c.b16 %v769, %v767
  %v828 = vpack.c.b16 %v772, %v770
  %v829 = vpack.c.b16 %v773, %v771
  %v830 = vpack.c.b16 %v776, %v774
  %v831 = vpack.c.b16 %v777, %v775
  %v832 = vpack.c.b16 %v780, %v778
  %v833 = vpack.c.b16 %v781, %v779
  %v834 = vpack.c.b16 %v784, %v782
  %v835 = vpack.c.b16 %v785, %v783
  %v836 = vpack.c.b16 %v788, %v786
  %v837 = vpack.c.b16 %v789, %v787
  %v838 = vpack.c.b16 %v792, %v790
  %v839 = vpack.c.b16 %v793, %v791
  %v840 = vpack.c.b16 %v796, %v794
  %v841 = vpack.c.b16 %v797, %v795
  %v842 = vpack.c.b16 %v800, %v798
  %v843 = vpack.c.b16 %v801, %v799
  %v844 = vpack.c.b16 %v804, %v802
  %v845 = vpack.c.b16 %v805, %v803
  %v846 = vpack.c.b16 %v808, %v806
  %v847 = vpack.c.b16 %v809, %v807
  %v848 = vpack.c.b16 %v812, %v810
  %v849 = vpack.c.b16 %v813, %v811
  %v850 = vpack.c.b16 %v816, %v814
  %v851 = vpack.c.b16 %v817, %v815
  %v852 = vpack.c.b16 %v820, %v818
  %v853 = vpack.c.b16 %v821, %v819
  %886 = vmatpush.bf16.msra.mxu0 %v836
  %887 = vmatpush.bf16.msra.mxu0 %v834
  %888 = vmatpush.bf16.msra.mxu0 %v832
  %889 = vmatpush.bf16.msra.mxu0 %v830
  %890 = vmatpush.bf16.msra.mxu0 %v828
  %891 = vmatpush.bf16.msra.mxu0 %v826
  %892 = vmatpush.bf16.msra.mxu0 %v824
  %893 = vmatpush.bf16.msra.mxu0 %v822
  %894 = vmatmul.bf16.gmra.mxu0 %v686
  %v895 = vpop.f32.mrf.mxu0
  %v896 = vadd.f32 %v722, %v895
  %v897 = vpop.f32.mrf.mxu0
  %898 = vdwg.mxu0
  %899 = vmatpush.bf16.msra.mxu0 %v852
  %900 = vmatpush.bf16.msra.mxu0 %v850
  %901 = vmatpush.bf16.msra.mxu0 %v848
  %902 = vmatpush.bf16.msra.mxu0 %v846
  %903 = vmatpush.bf16.msra.mxu0 %v844
  %904 = vmatpush.bf16.msra.mxu0 %v842
  %905 = vmatpush.bf16.msra.mxu0 %v840
  %906 = vmatpush.bf16.msra.mxu0 %v838
  %907 = vmatmul.bf16.gmra.mxu0 %v687
  %v908 = vpop.f32.mrf.mxu0
  %v909 = vadd.f32 %v896, %v908
  %v910 = vpop.f32.mrf.mxu0
  %911 = vdwg.mxu0
  %912 = vmatpush.bf16.msra.mxu0 %v837
  %913 = vmatpush.bf16.msra.mxu0 %v835
  %914 = vmatpush.bf16.msra.mxu0 %v833
  %915 = vmatpush.bf16.msra.mxu0 %v831
  %916 = vmatpush.bf16.msra.mxu0 %v829
  %917 = vmatpush.bf16.msra.mxu0 %v827
  %918 = vmatpush.bf16.msra.mxu0 %v825
  %919 = vmatpush.bf16.msra.mxu0 %v823
  %920 = vmatmul.bf16.gmra.mxu0 %v686
  %v921 = vpop.f32.mrf.mxu0
  %v922 = vadd.f32 %v723, %v921
  %v923 = vpop.f32.mrf.mxu0
  %924 = vdwg.mxu0
  %925 = vmatpush.bf16.msra.mxu0 %v853
  %926 = vmatpush.bf16.msra.mxu0 %v851
  %927 = vmatpush.bf16.msra.mxu0 %v849
  %928 = vmatpush.bf16.msra.mxu0 %v847
  %929 = vmatpush.bf16.msra.mxu0 %v845
  %930 = vmatpush.bf16.msra.mxu0 %v843
  %931 = vmatpush.bf16.msra.mxu0 %v841
  %932 = vmatpush.bf16.msra.mxu0 %v839
  %933 = vmatmul.bf16.gmra.mxu0 %v687
  %v934 = vpop.f32.mrf.mxu0
  %v935 = vadd.f32 %v922, %v934
  %v936 = vpop.f32.mrf.mxu0
  %937 = vdwg.mxu0
  %v938 = vxor.u32 %v909, 2147483648
  %v939 = vxor.u32 %v935, 2147483648
  %v940 = vmul.f32 %v938, 1.442695
  %v941 = vpow.pop %v940
  %v942 = vmul.f32 %v939, 1.442695
  %v943 = vpow.pop %v942
  %v944 = vadd.f32 %v941, 1.0
  %v945 = vadd.f32 %v943, 1.0
  %v946 = vrcp.pop %v944
  %v947 = vmul.f32 %v944, %v946
  %v948 = vsub.f32 1.0, %v947
  %v949 = vmul.f32 %v946, %v948
  %v950 = vadd.f32 %v946, %v949
  %vm951 = vweird.f32 %v944
  %vm952 = vweird.f32 %v946
  %vm953 = vmor %vm951, %vm952
  %v954 = vsel %vm953, %v946, %v950
  %v955 = vand.u32 2147483647, %v944
  %vm956 = vcmp.eq.f32.partialorder %v955, 8.507059e+37
  %v957 = vand.u32 %v944, 2147483648
  %v958 = vor.u32 1.1754944e-38, %v957
  %v959 = vsel %vm956, %v958, %v954
  %v960 = vmul.f32 1.0, %v959
  %v961 = vrcp.pop %v945
  %v962 = vmul.f32 %v945, %v961
  %v963 = vsub.f32 1.0, %v962
  %v964 = vmul.f32 %v961, %v963
  %v965 = vadd.f32 %v961, %v964
  %vm966 = vweird.f32 %v945
  %vm967 = vweird.f32 %v961
  %vm968 = vmor %vm966, %vm967
  %v969 = vsel %vm968, %v961, %v965
  %v970 = vand.u32 2147483647, %v945
  %vm971 = vcmp.eq.f32.partialorder %v970, 8.507059e+37
  %v972 = vand.u32 %v945, 2147483648
  %v973 = vor.u32 1.1754944e-38, %v972
  %v974 = vsel %vm971, %v973, %v969
  %v975 = vmul.f32 1.0, %v974
  %976 = vst [vmem:[%s10] sm:$0xff] %v960
  %977 = vst [vmem:[%s10 + $0x8] sm:$0xff] %v975
  %978 = vst [vmem:[%s11] sm:$0xff] %v520
  %979 = vst [vmem:[%s11 + $0x8] sm:$0xff] %v546
  // Predicated region
  $region42: #{vae_forward.1} parent=0 // pred_check
    _
  $region43: #{vae_forward.1} parent=0 // pred_check_branch
    %981 = sbr.rel (0) target = $region45
  $region44: #{vae_forward.1} parent=0 // pred_region
    _
  $region45: #{vae_forward.1} parent=0 // pred_fallthru
    _
  // Predicated region
  $region46: #{vae_forward.1} parent=0 // pred_check
    _
  $region47: #{vae_forward.1} parent=0 // pred_check_branch
    %983 = sbr.rel (0) target = $region49
  $region48: #{vae_forward.1} parent=0 // pred_region
    _
  $region49: #{vae_forward.1} parent=0 // pred_fallthru
    _
  // Predicated region
  $region50: #{vae_forward.1} parent=0 // pred_check
    _
  $region51: #{vae_forward.1} parent=0 // pred_check_branch
    %985 = sbr.rel (0) target = $region53
  $region52: #{vae_forward.1} parent=0 // pred_region
    _
  $region53: #{vae_forward.1} parent=0 // pred_fallthru
    _
  // Predicated region
  $region54: #{vae_forward.1} parent=0 // pred_check
    _
  $region55: #{vae_forward.1} parent=0 // pred_check_branch
    %987 = sbr.rel (0) target = $region57
  $region56: #{vae_forward.1} parent=0 // pred_region
    _
  $region57: #{vae_forward.1} parent=0 // pred_fallthru
    _

</llo_original>
